<compile_context>
chip_gen: v7x
topology: tpu7x:2x2x1
jax: 0.10.0
libtpu: 0.0.40
codegen_flags: <defaults>
</compile_context>

<pallas_src>
import functools
import math

import jax
import jax.numpy as jnp
from jax import lax
from jax.experimental import pallas as pl
from jax.experimental.pallas import tpu as pltpu


# --------------------------------------------------------------------------- #
# Kernels
# --------------------------------------------------------------------------- #
def _gelu(h, approximate):
    if approximate:
        # tanh approximation routes through the EUP slot (otherwise idle when
        # the kernel is MXU-bound); slight deviation from torch.nn.GELU().
        return jax.nn.gelu(h, approximate=True)
    # exact (erf-based) GELU, matching torch.nn.GELU() default
    return 0.5 * h * (1.0 + lax.erf(h * (1.0 / math.sqrt(2.0))))


def _ffn_kernel_resident(x_ref, w1_ref, b1_ref, w2_ref, b2_ref, o_ref,
                         *, approximate_gelu):
    # Weights fully VMEM-resident (constant index maps); no reduction axis,
    # no accumulator scratch needed.
    h = jnp.dot(x_ref[...], w1_ref[...], preferred_element_type=jnp.float32)
    h = h + b1_ref[...].astype(jnp.float32)
    h = _gelu(h, approximate_gelu)
    y = jnp.dot(h.astype(w2_ref.dtype), w2_ref[...],
                preferred_element_type=jnp.float32)
    o_ref[...] = (y + b2_ref[...].astype(jnp.float32)).astype(o_ref.dtype)


def _ffn_kernel_tiled(x_ref, w1_ref, b1_ref, w2_ref, b2_ref, o_ref, acc_ref,
                      *, approximate_gelu):
    # Hidden dimension tiled on grid axis 1 ("arbitrary", reduction last);
    # output tile stays resident across the hidden axis, accumulated in f32.
    h_idx = pl.program_id(1)

    @pl.when(h_idx == 0)
    def _():
        acc_ref[...] = jnp.zeros_like(acc_ref)

    h = jnp.dot(x_ref[...], w1_ref[...], preferred_element_type=jnp.float32)
    h = h + b1_ref[...].astype(jnp.float32)
    h = _gelu(h, approximate_gelu)
    acc_ref[...] += jnp.dot(h.astype(w2_ref.dtype), w2_ref[...],
                            preferred_element_type=jnp.float32)

    @pl.when(h_idx == pl.num_programs(1) - 1)
    def _():
        o_ref[...] = (acc_ref[...]
                      + b2_ref[...].astype(jnp.float32)).astype(o_ref.dtype)


# --------------------------------------------------------------------------- #
# Helpers
# --------------------------------------------------------------------------- #
def _round_up(x, m):
    return ((x + m - 1) // m) * m


def _pick_tile(total, target):
    """Largest multiple of 128 that divides `total` (a 128-multiple) and is <= target."""
    best, t = 128, 128
    while t <= min(total, target):
        if total % t == 0:
            best = t
        t += 128
    return best


@functools.lru_cache(maxsize=None)
def _vmem_budget_bytes():
    """~75% of physical per-core VMEM; conservative v7x (64 MiB) fallback."""
    phys = 64 * 1024 * 1024
    try:
        info = pltpu.get_tpu_info()
        phys = int(getattr(info, "vmem_capacity_bytes", phys))
    except Exception:
        pass
    return min(int(phys * 3 // 4), 96 * 1024 * 1024)


def _resident_vmem_bytes(tm, dim_p, hidden_p, out_p, sz):
    # conservative: 2x buffers on every BlockSpec operand + f32 gelu temp
    buf = 2 * sz * (tm * dim_p + dim_p * hidden_p + hidden_p
                    + hidden_p * out_p + out_p + tm * out_p)
    return buf + 4 * tm * hidden_p


def _tiled_vmem_bytes(tm, dim_p, th, out_p, sz):
    buf = 2 * sz * (tm * dim_p + dim_p * th + th
                    + th * out_p + out_p + tm * out_p)
    return buf + 4 * (tm * out_p + 2 * tm * th)   # acc scratch + gelu temps


def prepare_ffn_params(w1, b1, w2, b2, compute_dtype=None):
    """Pad weights/biases to 128-multiples once (call eagerly, outside jit).

    Weights are stored transposed vs PyTorch: w1 (dim, hidden), w2 (hidden, out).
    Optionally cast to a compute dtype (e.g. jnp.bfloat16) for 2x MXU rate.
    """
    dim, hidden = w1.shape
    out_dim = w2.shape[1]
    dim_p = _round_up(dim, 128)
    hidden_p = _round_up(hidden, 128)
    out_p = _round_up(out_dim, 128)
    if compute_dtype is not None:
        w1, b1, w2, b2 = (a.astype(compute_dtype) for a in (w1, b1, w2, b2))
    w1p = jnp.pad(w1, ((0, dim_p - dim), (0, hidden_p - hidden)))
    b1p = jnp.pad(b1, (0, hidden_p - hidden)).reshape(1, hidden_p)
    w2p = jnp.pad(w2, ((0, hidden_p - hidden), (0, out_p - out_dim)))
    b2p = jnp.pad(b2, (0, out_p - out_dim)).reshape(1, out_p)
    return w1p, b1p, w2p, b2p


# --------------------------------------------------------------------------- #
# Wrapper
# --------------------------------------------------------------------------- #
@functools.partial(jax.jit, static_argnames=("out_dim", "tm", "th",
                                             "approximate_gelu", "force_tiled"))
def feed_forward(x, w1p, b1p, w2p, b2p, *, out_dim, tm=512, th=512,
                 approximate_gelu=False, force_tiled=False):
    """x: (..., dim) -> (..., out_dim).  Params must come from prepare_ffn_params."""
    orig_shape = x.shape
    dim = orig_shape[-1]
    M = math.prod(orig_shape[:-1]) if len(orig_shape) > 1 else 1

    dim_p, hidden_p = w1p.shape
    out_p = w2p.shape[1]
    sz = max(x.dtype.itemsize, w1p.dtype.itemsize)
    budget = _vmem_budget_bytes()

    # ---- tile selection ----------------------------------------------------
    tm_eff = min(tm, _round_up(M, 8))
    resident = (not force_tiled) and (
        _resident_vmem_bytes(tm_eff, dim_p, hidden_p, out_p, sz) <= budget)

    if resident:
        th_eff = hidden_p
    else:
        th_eff = _pick_tile(hidden_p, th)
        while (th_eff > 128 and
               _tiled_vmem_bytes(tm_eff, dim_p, th_eff, out_p, sz) > budget):
            th_eff = _pick_tile(hidden_p, th_eff - 128)
        while (tm_eff > 8 and
               _tiled_vmem_bytes(tm_eff, dim_p, th_eff, out_p, sz) > budget):
            tm_eff = max(8, _round_up(tm_eff // 2, 8))

    Mp = _round_up(M, tm_eff)
    m_tiles = Mp // tm_eff
    h_tiles = hidden_p // th_eff

    # ---- activation padding (skipped when already aligned) ------------------
    x2 = x.reshape(M, dim)
    if x2.dtype != w1p.dtype:
        x2 = x2.astype(w1p.dtype)
    if Mp != M or dim_p != dim:
        x2 = jnp.pad(x2, ((0, Mp - M), (0, dim_p - dim)))

    # ---- cost estimate (weights counted once per pass over the rows) -------
    weight_bytes = (dim_p * hidden_p + hidden_p * out_p) * w1p.dtype.itemsize
    cost = pl.CostEstimate(
        flops=2 * Mp * (dim_p * hidden_p + hidden_p * out_p),
        transcendentals=Mp * hidden_p,
        bytes_accessed=(Mp * dim_p * x2.dtype.itemsize
                        + (1 if resident else m_tiles) * weight_bytes
                        + (hidden_p + out_p) * b1p.dtype.itemsize
                        + Mp * out_p * x.dtype.itemsize),
    )

    if resident:
        kernel = functools.partial(_ffn_kernel_resident,
                                   approximate_gelu=approximate_gelu)
        grid_spec = pltpu.PrefetchScalarGridSpec(
            num_scalar_prefetch=0,
            grid=(m_tiles,),
            in_specs=[
                pl.BlockSpec((tm_eff, dim_p), lambda i: (i, 0)),
                pl.BlockSpec((dim_p, hidden_p), lambda i: (0, 0)),   # resident
                pl.BlockSpec((1, hidden_p), lambda i: (0, 0)),       # resident
                pl.BlockSpec((hidden_p, out_p), lambda i: (0, 0)),   # resident
                pl.BlockSpec((1, out_p), lambda i: (0, 0)),          # resident
            ],
            out_specs=pl.BlockSpec((tm_eff, out_p), lambda i: (i, 0)),
            scratch_shapes=(),
        )
        dim_sem = ("parallel",)
    else:
        kernel = functools.partial(_ffn_kernel_tiled,
                                   approximate_gelu=approximate_gelu)
        grid_spec = pltpu.PrefetchScalarGridSpec(
            num_scalar_prefetch=0,
            grid=(m_tiles, h_tiles),              # (rows, hidden-reduction)
            in_specs=[
                pl.BlockSpec((tm_eff, dim_p), lambda i, h: (i, 0)),
                pl.BlockSpec((dim_p, th_eff), lambda i, h: (0, h)),
                pl.BlockSpec((1, th_eff), lambda i, h: (0, h)),
                pl.BlockSpec((th_eff, out_p), lambda i, h: (h, 0)),
                pl.BlockSpec((1, out_p), lambda i, h: (0, 0)),
            ],
            out_specs=pl.BlockSpec((tm_eff, out_p), lambda i, h: (i, 0)),
            scratch_shapes=[pltpu.VMEM((tm_eff, out_p), jnp.float32)],
        )
        dim_sem = ("parallel", "arbitrary")

    y2 = pl.pallas_call(
        kernel,
        out_shape=jax.ShapeDtypeStruct((Mp, out_p), x.dtype),
        grid_spec=grid_spec,
        compiler_params=pltpu.CompilerParams(
            dimension_semantics=dim_sem,
            vmem_limit_bytes=budget,
        ),
        cost_estimate=cost,
    )(x2, w1p, b1p, w2p, b2p)

    return y2[:M, :out_dim].reshape(orig_shape[:-1] + (out_dim,))


def init_params(key, dim, hidden_dim, out_dim, dtype=jnp.float32):
    """Deterministic params mimicking torch.nn.Linear init ranges.

    Weights stored transposed vs PyTorch: shape (in_features, out_features).
    """
    k1, k2, k3, k4 = jax.random.split(key, 4)
    bound1 = 1.0 / math.sqrt(dim)
    bound2 = 1.0 / math.sqrt(hidden_dim)
    w1 = jax.random.uniform(k1, (dim, hidden_dim), dtype, -bound1, bound1)
    b1 = jax.random.uniform(k2, (hidden_dim,), dtype, -bound1, bound1)
    w2 = jax.random.uniform(k3, (hidden_dim, out_dim), dtype, -bound2, bound2)
    b2 = jax.random.uniform(k4, (out_dim,), dtype, -bound2, bound2)
    return w1, b1, w2, b2


if __name__ == "__main__":
    # TODO(synk): dropout is identity for p_dropout=0.0 (module default); a
    # nonzero p would need pltpu.prng_seed / prng_random_bits inside the kernel.

    def reference(x, w1, b1, w2, b2):
        h = x.reshape(-1, x.shape[-1]) @ w1 + b1
        h = 0.5 * h * (1.0 + lax.erf(h / math.sqrt(2.0)))
        y = h @ w2 + b2
        return y.reshape(x.shape[:-1] + (w2.shape[1],))

    key = jax.random.PRNGKey(0)

    # ---- Test 1: small module shapes (weights-resident fast path) ----------
    B, S, DIM, HIDDEN = 2, 8, 32, 64
    OUT = DIM
    kx, kp = jax.random.split(key)
    x = jax.random.normal(kx, (B, S, DIM), dtype=jnp.float32)
    w1, b1, w2, b2 = init_params(kp, DIM, HIDDEN, OUT)
    params = prepare_ffn_params(w1, b1, w2, b2)       # padded once, outside jit
    y = jax.block_until_ready(feed_forward(x, *params, out_dim=OUT))
    y_ref = reference(x, w1, b1, w2, b2)
    assert y.shape == y_ref.shape
    assert jnp.allclose(y, y_ref, atol=1e-4, rtol=1e-4), "mismatch (resident)"

    # ---- Test 2: ragged shapes, forced tiled/accumulator path --------------
    B2, S2, DIM2, HID2, OUT2 = 2, 17, 96, 320, 80      # none are 128-multiples
    kx2, kp2 = jax.random.split(kp)
    xb = jax.random.normal(kx2, (B2, S2, DIM2), dtype=jnp.float32)
    w1b, b1b, w2b, b2b = init_params(kp2, DIM2, HID2, OUT2)
    paramsb = prepare_ffn_params(w1b, b1b, w2b, b2b)
    yb = jax.block_until_ready(
        feed_forward(xb, *paramsb, out_dim=OUT2, tm=16, th=128,
                     force_tiled=True))
    yb_ref = reference(xb, w1b, b1b, w2b, b2b)
    assert yb.shape == yb_ref.shape
    assert jnp.allclose(yb, yb_ref, atol=2e-4, rtol=2e-4), "mismatch (tiled)"

    print("KERNEL_OK")
</pallas_src>

<mosaic_0001>
module attributes {stable_mosaic.version = 11 : i64} {
  func.func @_ffn_kernel_resident(%arg0: i32, %arg1: memref<16x128xf32, #tpu.memory_space<vmem>>, %arg2: memref<128x128xf32, #tpu.memory_space<vmem>>, %arg3: memref<1x128xf32, #tpu.memory_space<vmem>>, %arg4: memref<128x128xf32, #tpu.memory_space<vmem>>, %arg5: memref<1x128xf32, #tpu.memory_space<vmem>>, %arg6: memref<16x128xf32, #tpu.memory_space<vmem>>) attributes {dimension_semantics = [#tpu.dimension_semantics<parallel>], iteration_bounds = array<i64: 1>, scalar_prefetch = 0 : i64, scratch_operands = 0 : i64, tpu.core_type = #tpu.core_type<tc>, window_params = [{transform_indices = @transform_0, window_bounds = array<i64: 16, 128>}, {pipeline_mode = #tpu.pipeline_mode<synchronous>, transform_indices = @transform_1, window_bounds = array<i64: 128, 128>}, {pipeline_mode = #tpu.pipeline_mode<synchronous>, transform_indices = @transform_2, window_bounds = array<i64: 1, 128>}, {pipeline_mode = #tpu.pipeline_mode<synchronous>, transform_indices = @transform_3, window_bounds = array<i64: 128, 128>}, {pipeline_mode = #tpu.pipeline_mode<synchronous>, transform_indices = @transform_4, window_bounds = array<i64: 1, 128>}, {transform_indices = @transform_5, window_bounds = array<i64: 16, 128>}]} {
    %c0 = arith.constant 0 : index
    %c0_0 = arith.constant 0 : index
    %0 = vector.load %arg1[%c0, %c0_0] : memref<16x128xf32, #tpu.memory_space<vmem>>, vector<16x128xf32>
    %c0_1 = arith.constant 0 : index
    %c0_2 = arith.constant 0 : index
    %1 = vector.load %arg2[%c0_1, %c0_2] : memref<128x128xf32, #tpu.memory_space<vmem>>, vector<128x128xf32>
    %cst = arith.constant dense<0.000000e+00> : vector<16x128xf32>
    %2 = tpu.matmul %0, %1, %cst {dimension_numbers = #tpu.dot_dimension_numbers<[1], [0], [0], [1], [0, 0, 1, 1], [], []>} : vector<16x128xf32>, vector<128x128xf32>, vector<16x128xf32> -> vector<16x128xf32>
    %c0_3 = arith.constant 0 : index
    %c0_4 = arith.constant 0 : index
    %3 = vector.load %arg3[%c0_3, %c0_4] : memref<1x128xf32, #tpu.memory_space<vmem>>, vector<1x128xf32>
    %4 = vector.broadcast %3 : vector<1x128xf32> to vector<16x128xf32>
    %5 = arith.addf %2, %4 : vector<16x128xf32>
    %cst_5 = arith.constant 5.000000e-01 : f32
    %6 = vector.broadcast %cst_5 : f32 to vector<16x128xf32>
    %7 = arith.mulf %6, %5 : vector<16x128xf32>
    %cst_6 = arith.constant 0.707106769 : f32
    %8 = vector.broadcast %cst_6 : f32 to vector<16x128xf32>
    %9 = arith.mulf %5, %8 : vector<16x128xf32>
    %10 = math.erf %9 : vector<16x128xf32>
    %cst_7 = arith.constant 1.000000e+00 : f32
    %11 = vector.broadcast %cst_7 : f32 to vector<16x128xf32>
    %12 = arith.addf %11, %10 : vector<16x128xf32>
    %13 = arith.mulf %7, %12 : vector<16x128xf32>
    %c0_8 = arith.constant 0 : index
    %c0_9 = arith.constant 0 : index
    %14 = vector.load %arg4[%c0_8, %c0_9] : memref<128x128xf32, #tpu.memory_space<vmem>>, vector<128x128xf32>
    %cst_10 = arith.constant dense<0.000000e+00> : vector<16x128xf32>
    %15 = tpu.matmul %13, %14, %cst_10 {dimension_numbers = #tpu.dot_dimension_numbers<[1], [0], [0], [1], [0, 0, 1, 1], [], []>} : vector<16x128xf32>, vector<128x128xf32>, vector<16x128xf32> -> vector<16x128xf32>
    %c0_11 = arith.constant 0 : index
    %c0_12 = arith.constant 0 : index
    %16 = vector.load %arg5[%c0_11, %c0_12] : memref<1x128xf32, #tpu.memory_space<vmem>>, vector<1x128xf32>
    %17 = vector.broadcast %16 : vector<1x128xf32> to vector<16x128xf32>
    %18 = arith.addf %15, %17 : vector<16x128xf32>
    %c0_13 = arith.constant 0 : index
    %c0_14 = arith.constant 0 : index
    %19 = vector.load %arg6[%c0_13, %c0_14] : memref<16x128xf32, #tpu.memory_space<vmem>>, vector<16x128xf32>
    tpu.vector_store %arg6[%c0_13, %c0_14], %18 {strides = array<i32>} : memref<16x128xf32, #tpu.memory_space<vmem>>, vector<16x128xf32>,
    return
  }
  func.func @transform_0(%arg0: i32) -> (i32, i32) {
    %c0_i32 = arith.constant 0 : i32
    %c0_i32_0 = arith.constant 0 : i32
    return %arg0, %c0_i32 : i32, i32
  }
  func.func @transform_1(%arg0: i32) -> (i32, i32) {
    %c0_i32 = arith.constant 0 : i32
    %c0_i32_0 = arith.constant 0 : i32
    %c0_i32_1 = arith.constant 0 : i32
    return %c0_i32, %c0_i32_0 : i32, i32
  }
  func.func @transform_2(%arg0: i32) -> (i32, i32) {
    %c0_i32 = arith.constant 0 : i32
    %c0_i32_0 = arith.constant 0 : i32
    %c0_i32_1 = arith.constant 0 : i32
    return %c0_i32, %c0_i32_0 : i32, i32
  }
  func.func @transform_3(%arg0: i32) -> (i32, i32) {
    %c0_i32 = arith.constant 0 : i32
    %c0_i32_0 = arith.constant 0 : i32
    %c0_i32_1 = arith.constant 0 : i32
    return %c0_i32, %c0_i32_0 : i32, i32
  }
  func.func @transform_4(%arg0: i32) -> (i32, i32) {
    %c0_i32 = arith.constant 0 : i32
    %c0_i32_0 = arith.constant 0 : i32
    %c0_i32_1 = arith.constant 0 : i32
    return %c0_i32, %c0_i32_0 : i32, i32
  }
  func.func @transform_5(%arg0: i32) -> (i32, i32) {
    %c0_i32 = arith.constant 0 : i32
    %c0_i32_0 = arith.constant 0 : i32
    return %arg0, %c0_i32 : i32, i32
  }
}

</mosaic_0001>

<llo_original>
// kernel: feed_forward.1
$region0: #{feed_forward.1}
  #allocation0 [shape = 'u32[]', space=smem, size = 0x4, offset = 0x4, fixed_abs, tag = 'smem constant byte address 0x4 - core index']
  #allocation1 [shape = 'u32[144,128]{1,0:T(1,128)}', space=vmem, size = 0x12000, scoped, tag = 'internal scratch']
  %s0 = inlined_call_operand.vmem [shape: f32[16,128], index: 0, kind: input, shape index: {}]
  %s1 = inlined_call_operand.hbm [shape: f32[128,128], index: 1, kind: input, shape index: {}]
  %s2 = inlined_call_operand.vmem [shape: f32[1,128], index: 2, kind: input, shape index: {}]
  %s3 = inlined_call_operand.hbm [shape: f32[128,128], index: 3, kind: input, shape index: {}]
  %s4 = inlined_call_operand.vmem [shape: f32[1,128], index: 4, kind: input, shape index: {}]
  %s5 = inlined_call_operand.vmem [shape: f32[16,128], index: 5, kind: output, shape index: {}]
  %s6 = sld [smem:[#allocation0]]
  $region38: #{feed_forward.1} parent=0
    _
  %s8 = ssub.s32 1, %s6
  %s9 = scalar_select 0, %s8, %s6
  $region1: #{feed_forward.1} parent=0
    #allocation2 [shape = 'u8[65536]{0}', space=vmem, size = 0x10000, scoped, tag = 'input window, operand 1, single buffered']
    #allocation3 [shape = 's32[1]{0}', space=sflag, size = 0x4, scoped, tag = 'scoped memory for feed_forward.1']
    #allocation4 [shape = 'u8[65536]{0}', space=vmem, size = 0x10000, scoped, tag = 'input window, operand 3, single buffered']
    #allocation5 [shape = 's32[1]{0}', space=sflag, size = 0x4, scoped, tag = 'scoped memory for feed_forward.1']
    %10 = vsyncpa [#allocation3], 0
    %11 = vsyncpa [#allocation5], 0
    // Predicated region
    $region2: #{feed_forward.1} parent=1 // pred_check
      _
    $region3: #{feed_forward.1} parent=1 // pred_check_branch
      %13 = sbr.rel (0) target = $region5
    $region4: #{feed_forward.1} parent=1 // pred_region
      _
    $region5: #{feed_forward.1} parent=1 // pred_fallthru
      _
    // Predicated region
    $region6: #{feed_forward.1} parent=1 // pred_check
      _
    $region7: #{feed_forward.1} parent=1 // pred_check_branch
      %15 = sbr.rel (0) target = $region9
    $region8: #{feed_forward.1} parent=1 // pred_region
      %s17 = ssub.s32 2048, 2048
      %18 = vsyncadd [#allocation3], %s17
      %s19 = sshll.u32 [#allocation2], 4
      %s20 = int_to_ptr.vmem [resolvable:$true] %s19
      %25 = dma.hbm_to_vmem [thread:$0]  %s1, 2048, %s20, [#allocation3], 128, 128, 8
    $region9: #{feed_forward.1} parent=1 // pred_fallthru
      _
    // Predicated region
    $region10: #{feed_forward.1} parent=1 // pred_check
      _
    $region11: #{feed_forward.1} parent=1 // pred_check_branch
      %27 = sbr.rel (0) target = $region13
    $region12: #{feed_forward.1} parent=1 // pred_region
      _
    $region13: #{feed_forward.1} parent=1 // pred_fallthru
      _
    // Predicated region
    $region14: #{feed_forward.1} parent=1 // pred_check
      _
    $region15: #{feed_forward.1} parent=1 // pred_check_branch
      %29 = sbr.rel (0) target = $region17
    $region16: #{feed_forward.1} parent=1 // pred_region
      %s31 = ssub.s32 2048, 2048
      %32 = vsyncadd [#allocation5], %s31
      %s33 = sshll.u32 [#allocation4], 4
      %s34 = int_to_ptr.vmem [resolvable:$true] %s33
      %39 = dma.hbm_to_vmem [thread:$0]  %s3, 2048, %s34, [#allocation5], 128, 128, 8
    $region17: #{feed_forward.1} parent=1 // pred_fallthru
      _
    // Predicated region
    $region18: #{feed_forward.1} parent=1 // pred_check
      _
    $region19: #{feed_forward.1} parent=1 // pred_check_branch
      %41 = sbr.rel (0) target = $region21
    $region20: #{feed_forward.1} parent=1 // pred_region
      _
    $region21: #{feed_forward.1} parent=1 // pred_fallthru
      _
    // Predicated region
    $region22: #{feed_forward.1} parent=1 // pred_check
      _
    $region23: #{feed_forward.1} parent=1 // pred_check_branch
      %43 = sbr.rel (0) target = $region25
    $region24: #{feed_forward.1} parent=1 // pred_region
      %44 = dma.done [#allocation3], 2048
    $region25: #{feed_forward.1} parent=1 // pred_fallthru
      _
    // Predicated region
    $region26: #{feed_forward.1} parent=1 // pred_check
      _
    $region27: #{feed_forward.1} parent=1 // pred_check_branch
      %46 = sbr.rel (0) target = $region29
    $region28: #{feed_forward.1} parent=1 // pred_region
      %47 = dma.done [#allocation5], 2048
    $region29: #{feed_forward.1} parent=1 // pred_fallthru
      _
    %v48 = vld [vmem:[%s0] sm:$0xff]
    %v49 = vld [vmem:[%s0 + $0x8] sm:$0xff]
    %v50 = vld [vmem:[#allocation2] sm:$0xff]
    %v51 = vld [vmem:[#allocation2 + $0x8] sm:$0xff]
    %v52 = vld [vmem:[#allocation2 + $0x10] sm:$0xff]
    %v53 = vld [vmem:[#allocation2 + $0x18] sm:$0xff]
    %v54 = vld [vmem:[#allocation2 + $0x20] sm:$0xff]
    %v55 = vld [vmem:[#allocation2 + $0x28] sm:$0xff]
    %v56 = vld [vmem:[#allocation2 + $0x30] sm:$0xff]
    %v57 = vld [vmem:[#allocation2 + $0x38] sm:$0xff]
    %v58 = vld [vmem:[#allocation2 + $0x40] sm:$0xff]
    %v59 = vld [vmem:[#allocation2 + $0x48] sm:$0xff]
    %v60 = vld [vmem:[#allocation2 + $0x50] sm:$0xff]
    %v61 = vld [vmem:[#allocation2 + $0x58] sm:$0xff]
    %v62 = vld [vmem:[#allocation2 + $0x60] sm:$0xff]
    %v63 = vld [vmem:[#allocation2 + $0x68] sm:$0xff]
    %v64 = vld [vmem:[#allocation2 + $0x70] sm:$0xff]
    %v65 = vld [vmem:[#allocation2 + $0x78] sm:$0xff]
    %v66 = vld [vmem:[%s2] sm:$0x1]
    %v68 = vlaneseq
    %v69 = vshrl.u32 %v68, 7
    %v70 = vsub.s32 0, %v69
    %v71 = vrot.slane %v66, %v70
    %73 = vmatprep.subr.mxu0 0.0
    %74 = vmatpush1.msra.mxu0 %v50
    %75 = vmatprep.subr.mxu0 0.0
    %76 = vmatpush1.msra.mxu0 %v51
    %77 = vmatprep.subr.mxu0 0.0
    %78 = vmatpush1.msra.mxu0 %v52
    %79 = vmatprep.subr.mxu0 0.0
    %80 = vmatpush1.msra.mxu0 %v53
    %81 = vmatprep.subr.mxu0 0.0
    %82 = vmatpush1.msra.mxu0 %v54
    %83 = vmatprep.subr.mxu0 0.0
    %84 = vmatpush1.msra.mxu0 %v55
    %85 = vmatprep.subr.mxu0 0.0
    %86 = vmatpush1.msra.mxu0 %v56
    %87 = vmatprep.subr.mxu0 0.0
    %88 = vmatpush1.msra.mxu0 %v57
    %89 = vmatprep.subr.mxu0 0.0
    %90 = vmatpush1.msra.mxu0 %v58
    %91 = vmatprep.subr.mxu0 0.0
    %92 = vmatpush1.msra.mxu0 %v59
    %93 = vmatprep.subr.mxu0 0.0
    %94 = vmatpush1.msra.mxu0 %v60
    %95 = vmatprep.subr.mxu0 0.0
    %96 = vmatpush1.msra.mxu0 %v61
    %97 = vmatprep.subr.mxu0 0.0
    %98 = vmatpush1.msra.mxu0 %v62
    %99 = vmatprep.subr.mxu0 0.0
    %100 = vmatpush1.msra.mxu0 %v63
    %101 = vmatprep.subr.mxu0 0.0
    %102 = vmatpush1.msra.mxu0 %v64
    %103 = vmatprep.subr.mxu0 0.0
    %104 = vmatpush1.msra.mxu0 %v65
    %105 = vmatprep.subr.mxu0 0.0
    %106 = vmatpush1.msra.mxu0 0.0
    %107 = vmatprep.subr.mxu0 0.0
    %108 = vmatpush1.msra.mxu0 0.0
    %109 = vmatprep.subr.mxu0 0.0
    %110 = vmatpush1.msra.mxu0 0.0
    %111 = vmatprep.subr.mxu0 0.0
    %112 = vmatpush1.msra.mxu0 0.0
    %113 = vmatprep.subr.mxu0 0.0
    %114 = vmatpush1.msra.mxu0 0.0
    %115 = vmatprep.subr.mxu0 0.0
    %116 = vmatpush1.msra.mxu0 0.0
    %117 = vmatprep.subr.mxu0 0.0
    %118 = vmatpush1.msra.mxu0 0.0
    %119 = vmatprep.subr.mxu0 0.0
    %120 = vmatpush1.msra.mxu0 0.0
    %121 = vmatprep.subr.mxu0 0.0
    %122 = vmatpush1.msra.mxu0 0.0
    %123 = vmatprep.subr.mxu0 0.0
    %124 = vmatpush1.msra.mxu0 0.0
    %125 = vmatprep.subr.mxu0 0.0
    %126 = vmatpush1.msra.mxu0 0.0
    %127 = vmatprep.subr.mxu0 0.0
    %128 = vmatpush1.msra.mxu0 0.0
    %129 = vmatprep.subr.mxu0 0.0
    %130 = vmatpush1.msra.mxu0 0.0
    %131 = vmatprep.subr.mxu0 0.0
    %132 = vmatpush1.msra.mxu0 0.0
    %133 = vmatprep.subr.mxu0 0.0
    %134 = vmatpush1.msra.mxu0 0.0
    %135 = vmatprep.subr.mxu0 0.0
    %136 = vmatpush1.msra.mxu0 0.0
    %137 = vmatprep.mubr.f32.mxu0 0.0
    %138 = vmatmul.mubr.f32.gmra.mrb[0].mxu0 %v48
    %v139 = vpop.f32.mrb[0].mxu0
    %v140 = vadd.f32 %v71, %v139
    %v141 = vpop.f32.mrb[0].mxu0
    %142 = vmatprep.mubr.f32.mxu0 0.0
    %143 = vmatmul.mubr.f32.gmra.mrb[0].mxu0 %v49
    %v144 = vpop.f32.mrb[0].mxu0
    %v145 = vadd.f32 %v71, %v144
    %v146 = vpop.f32.mrb[0].mxu0
    %147 = vdwg.mxu0
    %v148 = vmul.f32 %v140, 0.5
    %v149 = vmul.f32 %v145, 0.5
    %v150 = vmul.f32 %v140, 0.70710677
    %v151 = vmul.f32 %v145, 0.70710677
    %v152 = verf.f32.pop %v150
    %v153 = verf.f32.pop %v151
    %v154 = vadd.f32 %v152, 1.0
    %v155 = vadd.f32 %v153, 1.0
    %v156 = vmul.f32 %v148, %v154
    %v157 = vmul.f32 %v149, %v155
    %v158 = vld [vmem:[#allocation4] sm:$0xff]
    %v159 = vld [vmem:[#allocation4 + $0x8] sm:$0xff]
    %v160 = vld [vmem:[#allocation4 + $0x10] sm:$0xff]
    %v161 = vld [vmem:[#allocation4 + $0x18] sm:$0xff]
    %v162 = vld [vmem:[#allocation4 + $0x20] sm:$0xff]
    %v163 = vld [vmem:[#allocation4 + $0x28] sm:$0xff]
    %v164 = vld [vmem:[#allocation4 + $0x30] sm:$0xff]
    %v165 = vld [vmem:[#allocation4 + $0x38] sm:$0xff]
    %v166 = vld [vmem:[#allocation4 + $0x40] sm:$0xff]
    %v167 = vld [vmem:[#allocation4 + $0x48] sm:$0xff]
    %v168 = vld [vmem:[#allocation4 + $0x50] sm:$0xff]
    %v169 = vld [vmem:[#allocation4 + $0x58] sm:$0xff]
    %v170 = vld [vmem:[#allocation4 + $0x60] sm:$0xff]
    %v171 = vld [vmem:[#allocation4 + $0x68] sm:$0xff]
    %v172 = vld [vmem:[#allocation4 + $0x70] sm:$0xff]
    %v173 = vld [vmem:[#allocation4 + $0x78] sm:$0xff]
    %v174 = vld [vmem:[%s4] sm:$0x1]
    %v176 = vlaneseq
    %v177 = vshrl.u32 %v176, 7
    %v178 = vsub.s32 0, %v177
    %v179 = vrot.slane %v174, %v178
    %181 = vmatprep.subr.mxu0 0.0
    %182 = vmatpush1.msra.mxu0 %v158
    %183 = vmatprep.subr.mxu0 0.0
    %184 = vmatpush1.msra.mxu0 %v159
    %185 = vmatprep.subr.mxu0 0.0
    %186 = vmatpush1.msra.mxu0 %v160
    %187 = vmatprep.subr.mxu0 0.0
    %188 = vmatpush1.msra.mxu0 %v161
    %189 = vmatprep.subr.mxu0 0.0
    %190 = vmatpush1.msra.mxu0 %v162
    %191 = vmatprep.subr.mxu0 0.0
    %192 = vmatpush1.msra.mxu0 %v163
    %193 = vmatprep.subr.mxu0 0.0
    %194 = vmatpush1.msra.mxu0 %v164
    %195 = vmatprep.subr.mxu0 0.0
    %196 = vmatpush1.msra.mxu0 %v165
    %197 = vmatprep.subr.mxu0 0.0
    %198 = vmatpush1.msra.mxu0 %v166
    %199 = vmatprep.subr.mxu0 0.0
    %200 = vmatpush1.msra.mxu0 %v167
    %201 = vmatprep.subr.mxu0 0.0
    %202 = vmatpush1.msra.mxu0 %v168
    %203 = vmatprep.subr.mxu0 0.0
    %204 = vmatpush1.msra.mxu0 %v169
    %205 = vmatprep.subr.mxu0 0.0
    %206 = vmatpush1.msra.mxu0 %v170
    %207 = vmatprep.subr.mxu0 0.0
    %208 = vmatpush1.msra.mxu0 %v171
    %209 = vmatprep.subr.mxu0 0.0
    %210 = vmatpush1.msra.mxu0 %v172
    %211 = vmatprep.subr.mxu0 0.0
    %212 = vmatpush1.msra.mxu0 %v173
    %213 = vmatprep.subr.mxu0 0.0
    %214 = vmatpush1.msra.mxu0 0.0
    %215 = vmatprep.subr.mxu0 0.0
    %216 = vmatpush1.msra.mxu0 0.0
    %217 = vmatprep.subr.mxu0 0.0
    %218 = vmatpush1.msra.mxu0 0.0
    %219 = vmatprep.subr.mxu0 0.0
    %220 = vmatpush1.msra.mxu0 0.0
    %221 = vmatprep.subr.mxu0 0.0
    %222 = vmatpush1.msra.mxu0 0.0
    %223 = vmatprep.subr.mxu0 0.0
    %224 = vmatpush1.msra.mxu0 0.0
    %225 = vmatprep.subr.mxu0 0.0
    %226 = vmatpush1.msra.mxu0 0.0
    %227 = vmatprep.subr.mxu0 0.0
    %228 = vmatpush1.msra.mxu0 0.0
    %229 = vmatprep.subr.mxu0 0.0
    %230 = vmatpush1.msra.mxu0 0.0
    %231 = vmatprep.subr.mxu0 0.0
    %232 = vmatpush1.msra.mxu0 0.0
    %233 = vmatprep.subr.mxu0 0.0
    %234 = vmatpush1.msra.mxu0 0.0
    %235 = vmatprep.subr.mxu0 0.0
    %236 = vmatpush1.msra.mxu0 0.0
    %237 = vmatprep.subr.mxu0 0.0
    %238 = vmatpush1.msra.mxu0 0.0
    %239 = vmatprep.subr.mxu0 0.0
    %240 = vmatpush1.msra.mxu0 0.0
    %241 = vmatprep.subr.mxu0 0.0
    %242 = vmatpush1.msra.mxu0 0.0
    %243 = vmatprep.subr.mxu0 0.0
    %244 = vmatpush1.msra.mxu0 0.0
    %245 = vmatprep.mubr.f32.mxu0 0.0
    %246 = vmatmul.mubr.f32.gmra.mrb[0].mxu0 %v156
    %v247 = vpop.f32.mrb[0].mxu0
    %v248 = vadd.f32 %v179, %v247
    %v249 = vpop.f32.mrb[0].mxu0
    %250 = vmatprep.mubr.f32.mxu0 0.0
    %251 = vmatmul.mubr.f32.gmra.mrb[0].mxu0 %v157
    %v252 = vpop.f32.mrb[0].mxu0
    %v253 = vadd.f32 %v179, %v252
    %v254 = vpop.f32.mrb[0].mxu0
    %255 = vdwg.mxu0
    %256 = vst [vmem:[%s5] sm:$0xff] %v248
    %257 = vst [vmem:[%s5 + $0x8] sm:$0xff] %v253
    // Predicated region
    $region30: #{feed_forward.1} parent=1 // pred_check
      _
    $region31: #{feed_forward.1} parent=1 // pred_check_branch
      %259 = sbr.rel (0) target = $region33
    $region32: #{feed_forward.1} parent=1 // pred_region
      _
    $region33: #{feed_forward.1} parent=1 // pred_fallthru
      _
    // Predicated region
    $region34: #{feed_forward.1} parent=1 // pred_check
      _
    $region35: #{feed_forward.1} parent=1 // pred_check_branch
      %261 = sbr.rel (0) target = $region37
    $region36: #{feed_forward.1} parent=1 // pred_region
      _
    $region37: #{feed_forward.1} parent=1 // pred_fallthru
      _
    %262 = vsyncpa [#allocation3], 1
    %263 = vsyncpa [#allocation5], 1

</llo_original>
